<compile_context>
chip_gen: v6e
topology: v6e:2x2x1
jax: 0.10.0
libtpu: 0.0.40
codegen_flags: <defaults>
</compile_context>

<pallas_src>
import functools

import jax
import jax.numpy as jnp
from jax.experimental import pallas as pl
from jax.experimental.pallas import tpu as pltpu

EPS = 1e-5  # torch.nn.LayerNorm default


def prenorm_kernel(x_ref, gamma_ref, beta_ref, w_ref, b_ref, o_ref, normed_ref):
    """One grid step: (row tile i, output-column tile j).

    x_ref:      (TM, D)   input row tile (block index depends on i only)
    gamma_ref:  (1, D)    LayerNorm weight (grid-invariant)
    beta_ref:   (1, D)    LayerNorm bias   (grid-invariant)
    w_ref:      (D, TN)   Linear weight column tile, (in, out) layout
    b_ref:      (1, TN)   Linear bias column tile
    o_ref:      (TM, TN)  output tile (lane-dense)
    normed_ref: (TM, D)   VMEM scratch: LayerNorm(x) for the current row tile
    """
    j = pl.program_id(1)

    # LayerNorm statistics once per row tile; stash normalized rows in VMEM.
    @pl.when(j == 0)
    def _():
        x = x_ref[...]
        if x.dtype != jnp.float32:
            x = x.astype(jnp.float32)
        inv_d = jnp.float32(1.0 / x.shape[-1])
        mean = jnp.sum(x, axis=-1, keepdims=True) * inv_d
        xc = x - mean
        # Two-pass variance (torch: unbiased=False); robust when |mean| >> std.
        var = jnp.sum(xc * xc, axis=-1, keepdims=True) * inv_d
        inv = jax.lax.rsqrt(var + EPS)          # EUP slot, effectively free
        g = gamma_ref[...]
        if g.dtype != jnp.float32:
            g = g.astype(jnp.float32)
        bt = beta_ref[...]
        if bt.dtype != jnp.float32:
            bt = bt.astype(jnp.float32)
        normed = xc * inv * g + bt
        normed_ref[...] = normed.astype(normed_ref.dtype)

    # fn: Linear(dim, dim) column tile on the MXU, f32 accumulation.
    y = jnp.dot(normed_ref[...], w_ref[...], preferred_element_type=jnp.float32)
    bias = b_ref[...]
    if bias.dtype != jnp.float32:
        bias = bias.astype(jnp.float32)
    o_ref[...] = (y + bias).astype(o_ref.dtype)


def _round_up(v, m):
    return (v + m - 1) // m * m


def _vmem_capacity_bytes():
    """Physical per-core VMEM; conservative fallback if the query fails."""
    try:
        cap = getattr(pltpu.get_tpu_info(), "vmem_capacity_bytes", None)
        if cap:
            return int(cap)
    except Exception:
        pass
    return 64 * 1024 * 1024  # v7x per-TensorCore figure (smallest current gen)


def _plan_tiles(M, D, x_isz, w_isz, o_isz, vmem_budget):
    """Pick (tm, tn) that fit the VMEM budget, preferring large lane-dense tiles."""
    # Output-column tile: full D when narrow / not 128-aligned, else 128-multiples.
    if D % 128 == 0 and D > 128:
        tn_candidates = sorted({t for t in (D, 2048, 1024, 512, 256, 128) if t <= D},
                               reverse=True)
    else:
        tn_candidates = [D]

    # Row tile: 8-aligned (or full M when M < 8); capped so the grid keeps
    # >= 2 row tiles for megacore ("parallel") sharding on v7x.
    if M <= 8:
        tm_candidates = [M]
    else:
        cap = min(_round_up(M, 8), 1024)
        cap = min(cap, max(8, _round_up(pl.cdiv(M, 2), 8)))
        tm_candidates = list(range(cap, 7, -8))

    def vmem_bytes(tm, tn):
        return (2 * tm * D * x_isz        # x row tile, double-buffered
                + 4 * D * 4               # gamma + beta (2 buffers each)
                + 2 * D * tn * w_isz      # W column tile, double-buffered
                + 2 * tn * 4              # bias tile, double-buffered
                + 2 * tm * tn * o_isz     # out tile, double-buffered
                + tm * D * w_isz          # normalized-row scratch
                + 3 * tm * D * 4          # f32 temporaries (x, xc, normed)
                + tm * tn * 4)            # f32 matmul accumulator

    fallback = None
    for tn in tn_candidates:
        for tm in tm_candidates:
            need = vmem_bytes(tm, tn)
            if need <= vmem_budget:
                if tm >= min(128, tm_candidates[0]):
                    return tm, tn, need
                if fallback is None:
                    fallback = (tm, tn, need)
                break  # largest fitting tm for this tn found; try smaller tn
    if fallback is not None:
        return fallback
    tm, tn = tm_candidates[-1], tn_candidates[-1]
    return tm, tn, vmem_bytes(tm, tn)


@functools.partial(
    jax.jit,
    static_argnames=("tm", "tn", "vmem_limit", "matmul_dtype", "out_dtype"))
def _prenorm_call(x, gamma, beta, w, b, *, tm, tn, vmem_limit, matmul_dtype,
                  out_dtype):
    B, S, D = x.shape
    M = B * S
    mm_dtype = jnp.dtype(matmul_dtype) if matmul_dtype is not None else jnp.dtype(w.dtype)

    x2 = x.reshape(M, D)
    gamma2 = gamma.reshape(1, D)
    beta2 = beta.reshape(1, D)
    b2 = b.reshape(1, D)
    w_c = w.astype(mm_dtype)

    grid = (pl.cdiv(M, tm), pl.cdiv(D, tn))

    x_isz = jnp.dtype(x.dtype).itemsize
    w_isz = jnp.dtype(mm_dtype).itemsize
    o_isz = jnp.dtype(out_dtype).itemsize
    cost = pl.CostEstimate(
        flops=2 * M * D * D + 8 * M * D,
        transcendentals=M,
        bytes_accessed=M * D * (x_isz + o_isz) + D * D * w_isz + 3 * D * 4,
    )

    out = pl.pallas_call(
        prenorm_kernel,
        out_shape=jax.ShapeDtypeStruct((M, D), out_dtype),
        grid_spec=pltpu.PrefetchScalarGridSpec(
            num_scalar_prefetch=0,
            grid=grid,
            in_specs=[
                pl.BlockSpec((tm, D), lambda i, j: (i, 0)),   # x: row tile
                pl.BlockSpec((1, D), lambda i, j: (0, 0)),    # gamma (invariant)
                pl.BlockSpec((1, D), lambda i, j: (0, 0)),    # beta (invariant)
                pl.BlockSpec((D, tn), lambda i, j: (0, j)),   # W: column tile
                pl.BlockSpec((1, tn), lambda i, j: (0, j)),   # bias: column tile
            ],
            out_specs=pl.BlockSpec((tm, tn), lambda i, j: (i, j)),  # lane-dense
            scratch_shapes=[pltpu.VMEM((tm, D), mm_dtype)],
        ),
        compiler_params=pltpu.CompilerParams(
            dimension_semantics=("parallel", "arbitrary"),
            vmem_limit_bytes=vmem_limit,
        ),
        cost_estimate=cost,
    )(x2, gamma2, beta2, w_c, b2)
    return out.reshape(B, S, D)


def prenorm(x, gamma, beta, w, b, *, matmul_dtype=jnp.bfloat16, out_dtype=None):
    """PreNorm forward: Linear(LayerNorm(x)).

    x: (B, S, D); gamma/beta: (D,) LayerNorm affine; w: (D, D) in (in, out)
    layout; b: (D,) Linear bias.  matmul_dtype=None keeps f32 MXU operands
    (verification path); default bf16 operands accumulate in f32 on the MXU.
    out_dtype=None keeps the input dtype (pass bf16 for bf16 pipelines to
    halve output HBM traffic).
    """
    B, S, D = x.shape
    M = B * S
    if out_dtype is None:
        out_dtype = x.dtype
    mm_dtype = jnp.dtype(matmul_dtype) if matmul_dtype is not None else jnp.dtype(w.dtype)

    vmem_cap = _vmem_capacity_bytes()
    budget = int(vmem_cap * 0.70)          # leave compiler / pipelining headroom
    tm, tn, needed = _plan_tiles(
        M, D,
        jnp.dtype(x.dtype).itemsize,
        jnp.dtype(mm_dtype).itemsize,
        jnp.dtype(out_dtype).itemsize,
        budget)
    vmem_limit = int(min(max(2 * needed, 16 * 1024 * 1024), int(vmem_cap * 0.85)))

    return _prenorm_call(
        x, gamma, beta, w, b,
        tm=tm, tn=tn, vmem_limit=vmem_limit,
        matmul_dtype=(None if matmul_dtype is None else jnp.dtype(matmul_dtype)),
        out_dtype=jnp.dtype(out_dtype))


def prenorm_reference(x, gamma, beta, w, b):
    mean = jnp.mean(x, axis=-1, keepdims=True)
    var = jnp.mean((x - mean) ** 2, axis=-1, keepdims=True)
    normed = (x - mean) / jnp.sqrt(var + EPS) * gamma + beta
    return jnp.einsum("bsd,de->bse", normed, w,
                      precision=jax.lax.Precision.HIGHEST) + b


if __name__ == "__main__":
    key = jax.random.PRNGKey(0)

    def run_case(B, S, D):
        k_x, k_g, k_bt, k_w, k_b = jax.random.split(jax.random.fold_in(key, D), 5)
        x = jax.random.normal(k_x, (B, S, D), dtype=jnp.float32)
        gamma = 1.0 + 0.1 * jax.random.normal(k_g, (D,), dtype=jnp.float32)
        beta = 0.1 * jax.random.normal(k_bt, (D,), dtype=jnp.float32)
        w = jax.random.normal(k_w, (D, D), dtype=jnp.float32) * 0.02
        b = jax.random.normal(k_b, (D,), dtype=jnp.float32) * 0.02

        ref = prenorm_reference(x, gamma, beta, w, b)

        # Strict path: f32 MXU operands.
        out_f32 = jax.block_until_ready(
            prenorm(x, gamma, beta, w, b, matmul_dtype=None))
        assert out_f32.shape == (B, S, D)
        assert jnp.allclose(out_f32, ref, atol=5e-4, rtol=5e-4), \
            f"f32 path mismatch (D={D})"

        # Fast path: bf16 MXU operands, f32 accumulation.
        out_bf16 = jax.block_until_ready(prenorm(x, gamma, beta, w, b))
        assert out_bf16.shape == (B, S, D)
        assert jnp.allclose(out_bf16, ref, atol=2e-2, rtol=2e-2), \
            f"bf16 path mismatch (D={D})"

    run_case(2, 8, 128)   # lane-dense feature dim (preferred layout)
    run_case(2, 8, 32)    # narrow D: full-extent blocks, still correct
    print("KERNEL_OK")
</pallas_src>

<mosaic_0001>
module attributes {stable_mosaic.version = 11 : i64} {
  func.func @prenorm_kernel(%arg0: i32, %arg1: i32, %arg2: memref<8x128xf32, #tpu.memory_space<vmem>>, %arg3: memref<1x128xf32, #tpu.memory_space<vmem>>, %arg4: memref<1x128xf32, #tpu.memory_space<vmem>>, %arg5: memref<128x128xf32, #tpu.memory_space<vmem>>, %arg6: memref<1x128xf32, #tpu.memory_space<vmem>>, %arg7: memref<8x128xf32, #tpu.memory_space<vmem>>, %arg8: memref<8x128xf32, #tpu.memory_space<vmem>>) attributes {dimension_semantics = [#tpu.dimension_semantics<parallel>, #tpu.dimension_semantics<arbitrary>], iteration_bounds = array<i64: 2, 1>, scalar_prefetch = 0 : i64, scratch_operands = 1 : i64, tpu.core_type = #tpu.core_type<tc>, window_params = [{transform_indices = @transform_0, window_bounds = array<i64: 8, 128>}, {pipeline_mode = #tpu.pipeline_mode<synchronous>, transform_indices = @transform_1, window_bounds = array<i64: 1, 128>}, {pipeline_mode = #tpu.pipeline_mode<synchronous>, transform_indices = @transform_2, window_bounds = array<i64: 1, 128>}, {transform_indices = @transform_3, window_bounds = array<i64: 128, 128>}, {transform_indices = @transform_4, window_bounds = array<i64: 1, 128>}, {transform_indices = @transform_5, window_bounds = array<i64: 8, 128>}]} {
    %c0_i32 = arith.constant 0 : i32
    %0 = arith.cmpi eq, %arg1, %c0_i32 : i32
    %1 = arith.extui %0 : i1 to i32
    %c0_i32_0 = arith.constant 0 : i32
    %2 = arith.cmpi ne, %1, %c0_i32_0 : i32
    scf.if %2 {
      %c0_8 = arith.constant 0 : index
      %c0_9 = arith.constant 0 : index
      %10 = vector.load %arg2[%c0_8, %c0_9] : memref<8x128xf32, #tpu.memory_space<vmem>>, vector<8x128xf32>
      %cst_10 = arith.constant dense<0.000000e+00> : vector<8xf32>
      %11 = vector.multi_reduction <add>, %10, %cst_10 [1] : vector<8x128xf32> to vector<8xf32>
      %12 = vector.shape_cast %11 : vector<8xf32> to vector<8x1xf32>
      %cst_11 = arith.constant 7.812500e-03 : f32
      %13 = vector.broadcast %cst_11 : f32 to vector<8x1xf32>
      %14 = arith.mulf %12, %13 : vector<8x1xf32>
      %15 = vector.broadcast %14 : vector<8x1xf32> to vector<8x128xf32>
      %16 = arith.subf %10, %15 : vector<8x128xf32>
      %17 = arith.mulf %16, %16 : vector<8x128xf32>
      %cst_12 = arith.constant dense<0.000000e+00> : vector<8xf32>
      %18 = vector.multi_reduction <add>, %17, %cst_12 [1] : vector<8x128xf32> to vector<8xf32>
      %19 = vector.shape_cast %18 : vector<8xf32> to vector<8x1xf32>
      %cst_13 = arith.constant 7.812500e-03 : f32
      %20 = vector.broadcast %cst_13 : f32 to vector<8x1xf32>
      %21 = arith.mulf %19, %20 : vector<8x1xf32>
      %cst_14 = arith.constant 9.99999974E-6 : f32
      %22 = vector.broadcast %cst_14 : f32 to vector<8x1xf32>
      %23 = arith.addf %21, %22 : vector<8x1xf32>
      %24 = math.rsqrt %23 : vector<8x1xf32>
      %c0_15 = arith.constant 0 : index
      %c0_16 = arith.constant 0 : index
      %25 = vector.load %arg3[%c0_15, %c0_16] : memref<1x128xf32, #tpu.memory_space<vmem>>, vector<1x128xf32>
      %c0_17 = arith.constant 0 : index
      %c0_18 = arith.constant 0 : index
      %26 = vector.load %arg4[%c0_17, %c0_18] : memref<1x128xf32, #tpu.memory_space<vmem>>, vector<1x128xf32>
      %27 = vector.broadcast %24 : vector<8x1xf32> to vector<8x128xf32>
      %28 = arith.mulf %16, %27 : vector<8x128xf32>
      %29 = vector.broadcast %25 : vector<1x128xf32> to vector<8x128xf32>
      %30 = arith.mulf %28, %29 : vector<8x128xf32>
      %31 = vector.broadcast %26 : vector<1x128xf32> to vector<8x128xf32>
      %32 = arith.addf %30, %31 : vector<8x128xf32>
      %c0_19 = arith.constant 0 : index
      %c0_20 = arith.constant 0 : index
      %33 = vector.load %arg8[%c0_19, %c0_20] : memref<8x128xf32, #tpu.memory_space<vmem>>, vector<8x128xf32>
      tpu.vector_store %arg8[%c0_19, %c0_20], %32 {strides = array<i32>} : memref<8x128xf32, #tpu.memory_space<vmem>>, vector<8x128xf32>,
    } else {
    }
    %c0 = arith.constant 0 : index
    %c0_1 = arith.constant 0 : index
    %3 = vector.load %arg8[%c0, %c0_1] : memref<8x128xf32, #tpu.memory_space<vmem>>, vector<8x128xf32>
    %c0_2 = arith.constant 0 : index
    %c0_3 = arith.constant 0 : index
    %4 = vector.load %arg5[%c0_2, %c0_3] : memref<128x128xf32, #tpu.memory_space<vmem>>, vector<128x128xf32>
    %cst = arith.constant dense<0.000000e+00> : vector<8x128xf32>
    %5 = tpu.matmul %3, %4, %cst {dimension_numbers = #tpu.dot_dimension_numbers<[1], [0], [0], [1], [0, 0, 1, 1], [], []>} : vector<8x128xf32>, vector<128x128xf32>, vector<8x128xf32> -> vector<8x128xf32>
    %c0_4 = arith.constant 0 : index
    %c0_5 = arith.constant 0 : index
    %6 = vector.load %arg6[%c0_4, %c0_5] : memref<1x128xf32, #tpu.memory_space<vmem>>, vector<1x128xf32>
    %7 = vector.broadcast %6 : vector<1x128xf32> to vector<8x128xf32>
    %8 = arith.addf %5, %7 : vector<8x128xf32>
    %c0_6 = arith.constant 0 : index
    %c0_7 = arith.constant 0 : index
    %9 = vector.load %arg7[%c0_6, %c0_7] : memref<8x128xf32, #tpu.memory_space<vmem>>, vector<8x128xf32>
    tpu.vector_store %arg7[%c0_6, %c0_7], %8 {strides = array<i32>} : memref<8x128xf32, #tpu.memory_space<vmem>>, vector<8x128xf32>,
    return
  }
  func.func @transform_0(%arg0: i32, %arg1: i32) -> (i32, i32) {
    %c0_i32 = arith.constant 0 : i32
    %c0_i32_0 = arith.constant 0 : i32
    return %arg0, %c0_i32 : i32, i32
  }
  func.func @transform_1(%arg0: i32, %arg1: i32) -> (i32, i32) {
    %c0_i32 = arith.constant 0 : i32
    %c0_i32_0 = arith.constant 0 : i32
    %c0_i32_1 = arith.constant 0 : i32
    return %c0_i32, %c0_i32_0 : i32, i32
  }
  func.func @transform_2(%arg0: i32, %arg1: i32) -> (i32, i32) {
    %c0_i32 = arith.constant 0 : i32
    %c0_i32_0 = arith.constant 0 : i32
    %c0_i32_1 = arith.constant 0 : i32
    return %c0_i32, %c0_i32_0 : i32, i32
  }
  func.func @transform_3(%arg0: i32, %arg1: i32) -> (i32, i32) {
    %c0_i32 = arith.constant 0 : i32
    %c0_i32_0 = arith.constant 0 : i32
    return %c0_i32, %arg1 : i32, i32
  }
  func.func @transform_4(%arg0: i32, %arg1: i32) -> (i32, i32) {
    %c0_i32 = arith.constant 0 : i32
    %c0_i32_0 = arith.constant 0 : i32
    return %c0_i32, %arg1 : i32, i32
  }
  func.func @transform_5(%arg0: i32, %arg1: i32) -> (i32, i32) {
    %c0_i32 = arith.constant 0 : i32
    return %arg0, %arg1 : i32, i32
  }
}

</mosaic_0001>

<llo_original>
// kernel: _prenorm_call.1
$region0: #{_prenorm_call.1}
  #allocation0 [shape = 'u32[]', space=smem, size = 0x4, offset = 0x4, fixed_abs, tag = 'smem constant byte address 0x4 - core index']
  #allocation1 [shape = 'u32[144,128]{1,0:T(1,128)}', space=vmem, size = 0x12000, scoped, tag = 'internal scratch']
  #allocation2 [shape = 'f32[8,128]{1,0:T(8,128)}', space=vmem, size = 0x1000, scoped, tag = 'scratch operand']
  %s0 = inlined_call_operand.hbm [shape: f32[16,128], index: 0, kind: input, shape index: {}]
  %s1 = inlined_call_operand.vmem [shape: f32[1,128], index: 1, kind: input, shape index: {}]
  %s2 = inlined_call_operand.vmem [shape: f32[1,128], index: 2, kind: input, shape index: {}]
  %s3 = inlined_call_operand.hbm [shape: f32[128,128], index: 3, kind: input, shape index: {}]
  %s4 = inlined_call_operand.vmem [shape: f32[1,128], index: 4, kind: input, shape index: {}]
  %s5 = inlined_call_operand.hbm [shape: f32[16,128], index: 5, kind: output, shape index: {}]
  %s6 = sld [smem:[#allocation0]]
  $region65: #{_prenorm_call.1} parent=0
    _
  %s8 = ssub.s32 1, %s6
  %s9 = scalar_select 0, %s8, %s6
  $region1: #{_prenorm_call.1} parent=0
    #allocation3 [shape = 'u8[8192]{0}', space=vmem, size = 0x2000, scoped, tag = 'input window, operand 0']
    #allocation4 [shape = 's32[2]{0}', space=sflag, size = 0x8, scoped, tag = 'scoped memory for _prenorm_call.1']
    #allocation5 [shape = 's32[2]{0}', space=sflag, size = 0x8, scoped, tag = 'scoped memory for _prenorm_call.1']
    #allocation6 [shape = 'u8[65536]{0}', space=vmem, size = 0x10000, scoped, tag = 'input window, operand 3, single buffered']
    #allocation7 [shape = 's32[1]{0}', space=sflag, size = 0x4, scoped, tag = 'scoped memory for _prenorm_call.1']
    #allocation8 [shape = 'u8[8192]{0}', space=vmem, size = 0x2000, scoped, tag = 'output window, operand 0']
    %10 = vsyncpa [#allocation4], 0
    %s11 = scalar_lea.sflag [#allocation4], 1
    %12 = vsyncpa %s11, 0
    %13 = vsyncpa [#allocation7], 0
    %14 = vsyncpa [#allocation5], 0
    %s15 = scalar_lea.sflag [#allocation5], 1
    %16 = vsyncpa %s15, 0
    loop: start=0, step=1, limit=4
    $region2: #{_prenorm_call.1} parent=1 // loop_pre_header
      _
    $region3: #{_prenorm_call.1} parent=1 // loop_header
      %s18 = sphi 0, %s22
      %p19 = scmp.ge.s32.totalorder %s18, 4
      %s25 = sphi 0, %s37
      %s26 = sphi 0, %s33
      %s27 = sphi 0, %s25
      %s28 = sphi 0, %s26
      %s29 = sphi 0, %s27
      %s30 = sphi 0, %s28
      %s40 = sphi 0, %s42
      %s43 = sphi 0, %s40
      %s44 = sphi 0, %s43
      %s60 = sphi 0, %s44
      %s64 = sphi 0, %s64
      %s66 = sphi 0, %s64
      %s67 = sphi 0, %s66
      %s81 = sphi 0, %s67
      %s85 = sphi 0, %s85
      %s87 = sphi 0, %s85
      %s88 = sphi 0, %s87
      %s102 = sphi 0, %s88
      %s108 = sphi 0, %s110
      %s111 = sphi 0, %s108
      %s112 = sphi 0, %s111
      %s128 = sphi 0, %s112
      %s134 = sphi 0, %s136
      %s137 = sphi 0, %s134
      %s138 = sphi 0, %s137
      %s154 = sphi 0, %s138
      %s162 = sphi 0, %s164
      %s165 = sphi 0, %s162
      %s166 = sphi 0, %s165
      %s182 = sphi 0, %s166
    $region4: #{_prenorm_call.1} parent=1 // loop_header_branch
      %21 = sbr.rel (%p19) target = $region8
    $region5: #{_prenorm_call.1} parent=1 // loop_body
      %s23 = ssub.s32 %s18, 1
      %s24 = ssub.s32 %s18, 2
      %s31 = sadd.s32 1, %s26
      %p32 = scmp.ge.s32.totalorder %s31, 1
      %s33 = scalar_select %p32, 0, %s31
      %s34 = sadd.s32 1, %s25
      %s35 = scalar_select %p32, %s34, %s25
      %p36 = scmp.ge.s32.totalorder %s35, 2
      %s37 = scalar_select %p36, 0, %s35
      %s38 = ssub.s32 %s25, %s37
      %p39 = scmp.eq.s32.totalorder %s38, 0
      %s41 = sadd.s32 %s40, 1
      %s42 = scalar_select %p39, %s40, %s41
      %p45 = pneg %p39
      %p46 = scmp.eq.s32.totalorder %s18, 1
      %p47 = por %p45, %p46
      %p48 = scmp.ne.s32.totalorder %s40, %s43
      %p49 = scmp.eq.s32.totalorder %s18, 0
      %p50 = por %p48, %p49
      %p51 = scmp.ne.s32.totalorder %s40, %s43
      %p52 = scmp.eq.s32.totalorder %s23, 1
      %p53 = por %p51, %p52
      %p54 = scmp.ne.s32.totalorder %s43, %s44
      %p55 = scmp.eq.s32.totalorder %s23, 0
      %p56 = por %p54, %p55
      %p57 = scmp.ne.s32.totalorder %s43, %s44
      %p58 = scmp.eq.s32.totalorder %s24, 1
      %p59 = por %p57, %p58
      %p61 = scmp.ne.s32.totalorder %s44, %s60
      %p62 = scmp.eq.s32.totalorder %s24, 0
      %p63 = por %p61, %p62
      %s65 = sadd.s32 %s64, 1
      %p68 = scmp.eq.s32.totalorder %s18, 1
      %p69 = scmp.ne.s32.totalorder %s64, %s66
      %p70 = scmp.eq.s32.totalorder %s18, 0
      %p71 = por %p69, %p70
      %p72 = scmp.ne.s32.totalorder %s64, %s66
      %p73 = scmp.eq.s32.totalorder %s23, 1
      %p74 = por %p72, %p73
      %p75 = scmp.ne.s32.totalorder %s66, %s67
      %p76 = scmp.eq.s32.totalorder %s23, 0
      %p77 = por %p75, %p76
      %p78 = scmp.ne.s32.totalorder %s66, %s67
      %p79 = scmp.eq.s32.totalorder %s24, 1
      %p80 = por %p78, %p79
      %p82 = scmp.ne.s32.totalorder %s67, %s81
      %p83 = scmp.eq.s32.totalorder %s24, 0
      %p84 = por %p82, %p83
      %s86 = sadd.s32 %s85, 1
      %p89 = scmp.eq.s32.totalorder %s18, 1
      %p90 = scmp.ne.s32.totalorder %s85, %s87
      %p91 = scmp.eq.s32.totalorder %s18, 0
      %p92 = por %p90, %p91
      %p93 = scmp.ne.s32.totalorder %s85, %s87
      %p94 = scmp.eq.s32.totalorder %s23, 1
      %p95 = por %p93, %p94
      %p96 = scmp.ne.s32.totalorder %s87, %s88
      %p97 = scmp.eq.s32.totalorder %s23, 0
      %p98 = por %p96, %p97
      %p99 = scmp.ne.s32.totalorder %s87, %s88
      %p100 = scmp.eq.s32.totalorder %s24, 1
      %p101 = por %p99, %p100
      %p103 = scmp.ne.s32.totalorder %s88, %s102
      %p104 = scmp.eq.s32.totalorder %s24, 0
      %p105 = por %p103, %p104
      %s106 = ssub.s32 %s26, %s33
      %p107 = scmp.eq.s32.totalorder %s106, 0
      %s109 = sadd.s32 %s108, 1
      %s110 = scalar_select %p107, %s108, %s109
      %p113 = pneg %p107
      %p114 = scmp.eq.s32.totalorder %s18, 1
      %p115 = por %p113, %p114
      %p116 = scmp.ne.s32.totalorder %s108, %s111
      %p117 = scmp.eq.s32.totalorder %s18, 0
      %p118 = por %p116, %p117
      %p119 = scmp.ne.s32.totalorder %s108, %s111
      %p120 = scmp.eq.s32.totalorder %s23, 1
      %p121 = por %p119, %p120
      %p122 = scmp.ne.s32.totalorder %s111, %s112
      %p123 = scmp.eq.s32.totalorder %s23, 0
      %p124 = por %p122, %p123
      %p125 = scmp.ne.s32.totalorder %s111, %s112
      %p126 = scmp.eq.s32.totalorder %s24, 1
      %p127 = por %p125, %p126
      %p129 = scmp.ne.s32.totalorder %s112, %s128
      %p130 = scmp.eq.s32.totalorder %s24, 0
      %p131 = por %p129, %p130
      %s132 = ssub.s32 %s26, %s33
      %p133 = scmp.eq.s32.totalorder %s132, 0
      %s135 = sadd.s32 %s134, 1
      %s136 = scalar_select %p133, %s134, %s135
      %p139 = pneg %p133
      %p140 = scmp.eq.s32.totalorder %s18, 1
      %p141 = por %p139, %p140
      %p142 = scmp.ne.s32.totalorder %s134, %s137
      %p143 = scmp.eq.s32.totalorder %s18, 0
      %p144 = por %p142, %p143
      %p145 = scmp.ne.s32.totalorder %s134, %s137
      %p146 = scmp.eq.s32.totalorder %s23, 1
      %p147 = por %p145, %p146
      %p148 = scmp.ne.s32.totalorder %s137, %s138
      %p149 = scmp.eq.s32.totalorder %s23, 0
      %p150 = por %p148, %p149
      %p151 = scmp.ne.s32.totalorder %s137, %s138
      %p152 = scmp.eq.s32.totalorder %s24, 1
      %p153 = por %p151, %p152
      %p155 = scmp.ne.s32.totalorder %s138, %s154
      %p156 = scmp.eq.s32.totalorder %s24, 0
      %p157 = por %p155, %p156
      %s158 = ssub.s32 %s25, %s37
      %s159 = ssub.s32 %s26, %s33
      %s160 = sor.u32 %s158, %s159
      %p161 = scmp.eq.s32.totalorder %s160, 0
      %s163 = sadd.s32 %s162, 1
      %s164 = scalar_select %p161, %s162, %s163
      %p167 = pneg %p161
      %p168 = scmp.eq.s32.totalorder %s18, 1
      %p169 = por %p167, %p168
      %p170 = scmp.ne.s32.totalorder %s162, %s165
      %p171 = scmp.eq.s32.totalorder %s18, 0
      %p172 = por %p170, %p171
      %p173 = scmp.ne.s32.totalorder %s162, %s165
      %p174 = scmp.eq.s32.totalorder %s23, 1
      %p175 = por %p173, %p174
      %p176 = scmp.ne.s32.totalorder %s165, %s166
      %p177 = scmp.eq.s32.totalorder %s23, 0
      %p178 = por %p176, %p177
      %p179 = scmp.ne.s32.totalorder %s165, %s166
      %p180 = scmp.eq.s32.totalorder %s24, 1
      %p181 = por %p179, %p180
      %p183 = scmp.ne.s32.totalorder %s166, %s182
      %p184 = scmp.eq.s32.totalorder %s24, 0
      %p185 = por %p183, %p184
      %p186 = scmp.le.s32.totalorder 1, %s18
      %p187 = scmp.lt.s32.totalorder %s18, 3
      %p188 = pnand %p186, %p187
      %p189 = pneg %p188
      // Predicated region
      $region9: #{_prenorm_call.1} parent=5 // pred_check
        _
      $region10: #{_prenorm_call.1} parent=5 // pred_check_branch
        %191 = sbr.rel (%p188) target = $region12
      $region11: #{_prenorm_call.1} parent=5 // pred_region
        %s192 = ssub.s32 %s18, 1
        // Predicated region
        $region13: #{_prenorm_call.1} parent=11 // pred_check
          %p193 = pneg %p77
        $region14: #{_prenorm_call.1} parent=11 // pred_check_branch
          %195 = sbr.rel (%p193) target = $region16
        $region15: #{_prenorm_call.1} parent=11 // pred_region
          _
        $region16: #{_prenorm_call.1} parent=11 // pred_fallthru
          _
        // Predicated region
        $region17: #{_prenorm_call.1} parent=11 // pred_check
          %p196 = pneg %p98
        $region18: #{_prenorm_call.1} parent=11 // pred_check_branch
          %198 = sbr.rel (%p196) target = $region20
        $region19: #{_prenorm_call.1} parent=11 // pred_region
          _
        $region20: #{_prenorm_call.1} parent=11 // pred_fallthru
          _
        // Predicated region
        $region21: #{_prenorm_call.1} parent=11 // pred_check
          %p199 = pneg %p124
        $region22: #{_prenorm_call.1} parent=11 // pred_check_branch
          %201 = sbr.rel (%p199) target = $region24
        $region23: #{_prenorm_call.1} parent=11 // pred_region
          %s203 = ssub.s32 2048, 2048
          %204 = vsyncadd [#allocation7], %s203
          %s205 = smul.addr %s28, 128
          %s206 = scalar_lea.hbm %s3, %s205
          %s207 = sshll.u32 [#allocation6], 4
          %s208 = int_to_ptr.vmem [resolvable:$true] %s207
          %213 = dma.hbm_to_vmem [thread:$0]  %s206, 2048, %s208, [#allocation7], 128, 128, 8
        $region24: #{_prenorm_call.1} parent=11 // pred_fallthru
          _
        // Predicated region
        $region25: #{_prenorm_call.1} parent=11 // pred_check
          %p214 = pneg %p150
        $region26: #{_prenorm_call.1} parent=11 // pred_check_branch
          %216 = sbr.rel (%p214) target = $region28
        $region27: #{_prenorm_call.1} parent=11 // pred_region
          %p217 = scmp.lt.s32.totalorder %s28, 0
          %s218 = scalar_select %p217, %s28, 0
          %s219 = scalar_lea.vmem %s4, %s218
        $region28: #{_prenorm_call.1} parent=11 // pred_fallthru
          _
      $region12: #{_prenorm_call.1} parent=5 // pred_fallthru
        _
      %p220 = scmp.lt.s32.totalorder %s18, 2
      // Predicated region
      $region29: #{_prenorm_call.1} parent=5 // pred_check
        %p221 = pneg %p220
      $region30: #{_prenorm_call.1} parent=5 // pred_check_branch
        %223 = sbr.rel (%p221) target = $region32
      $region31: #{_prenorm_call.1} parent=5 // pred_region
        // Predicated region
        $region33: #{_prenorm_call.1} parent=31 // pred_check
          %p224 = pneg %p50
        $region34: #{_prenorm_call.1} parent=31 // pred_check_branch
          %226 = sbr.rel (%p224) target = $region36
        $region35: #{_prenorm_call.1} parent=31 // pred_region
          %s227 = sand.u32 %s40, 1
          %s228 = scalar_lea.sflag [#allocation4], %s227
          %s229 = sand.u32 %s40, 1
          %s230 = smul.addr %s229, 8
          %s231 = scalar_lea.vmem [#allocation3], %s230
          %s233 = ssub.s32 128, 128
          %234 = vsyncadd %s228, %s233
          %s235 = smul.addr %s25, 128
          %s236 = scalar_lea.hbm %s0, %s235
          %s238 = sshll.u32 %s231, 4
          %s239 = int_to_ptr.vmem [resolvable:$true] %s238
          %241 = dma.hbm_to_vmem [thread:$0]  %s236, 128, %s239, %s228
        $region36: #{_prenorm_call.1} parent=31 // pred_fallthru
          _
      $region32: #{_prenorm_call.1} parent=5 // pred_fallthru
        _
      %p242 = scmp.le.s32.totalorder 1, %s18
      %p243 = scmp.lt.s32.totalorder %s18, 3
      %p244 = pnand %p242, %p243
      %p245 = pneg %p244
      // Predicated region
      $region37: #{_prenorm_call.1} parent=5 // pred_check
        _
      $region38: #{_prenorm_call.1} parent=5 // pred_check_branch
        %247 = sbr.rel (%p244) target = $region40
      $region39: #{_prenorm_call.1} parent=5 // pred_region
        %s248 = ssub.s32 %s18, 1
        %s249 = sand.u32 %s43, 1
        %s250 = scalar_lea.sflag [#allocation4], %s249
        %s251 = sand.u32 %s43, 1
        %s252 = smul.addr %s251, 8
        %s253 = scalar_lea.vmem [#allocation3], %s252
        // Predicated region
        $region41: #{_prenorm_call.1} parent=39 // pred_check
          %p254 = pneg %p56
        $region42: #{_prenorm_call.1} parent=39 // pred_check_branch
          %256 = sbr.rel (%p254) target = $region44
        $region43: #{_prenorm_call.1} parent=39 // pred_region
          %257 = dma.done %s250, 128
        $region44: #{_prenorm_call.1} parent=39 // pred_fallthru
          _
        // Predicated region
        $region45: #{_prenorm_call.1} parent=39 // pred_check
          %p258 = pneg %p124
        $region46: #{_prenorm_call.1} parent=39 // pred_check_branch
          %260 = sbr.rel (%p258) target = $region48
        $region47: #{_prenorm_call.1} parent=39 // pred_region
          %261 = dma.done [#allocation7], 2048
        $region48: #{_prenorm_call.1} parent=39 // pred_fallthru
          _
        %s262 = sand.u32 %s43, 1
        %s263 = scalar_lea.sflag [#allocation4], %s262
        %s264 = sand.u32 %s43, 1
        %s265 = smul.addr %s264, 8
        %s266 = scalar_lea.vmem [#allocation3], %s265
        %p267 = pneg %p56
        %p268 = pneg %p53
        %p269 = pneg %p77
        %p270 = pneg %p74
        %p271 = pneg %p98
        %p272 = pneg %p95
        %p273 = pneg %p124
        %p274 = pneg %p121
        %p275 = scmp.lt.s32.totalorder %s28, 0
        %s276 = scalar_select %p275, %s28, 0
        %s277 = scalar_lea.vmem %s4, %s276
        %p278 = pneg %p150
        %p279 = pneg %p147
        %p280 = pneg %p178
        %p281 = pneg %p175
        %s282 = sand.u32 %s165, 1
        %s283 = scalar_lea.sflag [#allocation5], %s282
        %s284 = sand.u32 %s165, 1
        %s285 = smul.addr %s284, 8
        %s286 = scalar_lea.vmem [#allocation8], %s285
        %p287 = scmp.lt.s32.totalorder %s28, 0
        %s288 = scalar_select %p287, %s28, 0
        %s289 = scalar_lea.vmem %s4, %s288
        %p290 = scmp.eq.s32.totalorder %s28, 0
        // Predicated region
        $region49: #{_prenorm_call.1} parent=39 // pred_check
          %p291 = pneg %p290
        $region50: #{_prenorm_call.1} parent=39 // pred_check_branch
          %293 = sbr.rel (%p291) target = $region52
        $region51: #{_prenorm_call.1} parent=39 // pred_region
          %v294 = vld [vmem:[%s253] sm:$0xff]
          %295 = vadd.xlane.f32.xlu0 %v294
          %v296 = vpop.xlane.xlu0 %295
          %v297 = vmul.f32 %v296, 0.0078125
          %v298 = vsub.f32 %v294, %v297
          %v299 = vmul.f32 %v298, %v298
          %300 = vadd.xlane.f32.xlu0 %v299
          %v301 = vpop.xlane.xlu0 %300
          %v302 = vmul.f32 %v301, 0.0078125
          %v303 = vadd.f32 %v302, 1e-05
          %v304 = vrsqrt.pop %v303
          %v305 = vld [vmem:[%s1] sm:$0x1]
          %v306 = vld [vmem:[%s2] sm:$0x1]
          %v307 = vmul.f32 %v298, %v304
          %v309 = vlaneseq
          %v310 = vshrl.u32 %v309, 7
          %v311 = vsub.s32 0, %v310
          %v312 = vrot.slane %v305, %v311
          %v314 = vmul.f32 %v307, %v312
          %v316 = vlaneseq
          %v317 = vshrl.u32 %v316, 7
          %v318 = vsub.s32 0, %v317
          %v319 = vrot.slane %v306, %v318
          %v321 = vadd.f32 %v314, %v319
          %322 = vst [vmem:[#allocation2] sm:$0xff] %v321
        $region52: #{_prenorm_call.1} parent=39 // pred_fallthru
          _
        %v323 = vld [vmem:[#allocation2] sm:$0xff]
        %v324 = vld [vmem:[#allocation6] sm:$0xff]
        %v325 = vld [vmem:[#allocation6 + $0x8] sm:$0xff]
        %v326 = vld [vmem:[#allocation6 + $0x10] sm:$0xff]
        %v327 = vld [vmem:[#allocation6 + $0x18] sm:$0xff]
        %v328 = vld [vmem:[#allocation6 + $0x20] sm:$0xff]
        %v329 = vld [vmem:[#allocation6 + $0x28] sm:$0xff]
        %v330 = vld [vmem:[#allocation6 + $0x30] sm:$0xff]
        %v331 = vld [vmem:[#allocation6 + $0x38] sm:$0xff]
        %v332 = vld [vmem:[#allocation6 + $0x40] sm:$0xff]
        %v333 = vld [vmem:[#allocation6 + $0x48] sm:$0xff]
        %v334 = vld [vmem:[#allocation6 + $0x50] sm:$0xff]
        %v335 = vld [vmem:[#allocation6 + $0x58] sm:$0xff]
        %v336 = vld [vmem:[#allocation6 + $0x60] sm:$0xff]
        %v337 = vld [vmem:[#allocation6 + $0x68] sm:$0xff]
        %v338 = vld [vmem:[#allocation6 + $0x70] sm:$0xff]
        %v339 = vld [vmem:[#allocation6 + $0x78] sm:$0xff]
        %v340 = vld [vmem:[%s289] sm:$0x1]
        %v342 = vlaneseq
        %v343 = vshrl.u32 %v342, 7
        %v344 = vsub.s32 0, %v343
        %v345 = vrot.slane %v340, %v344
        %347 = vmatprep.subr.mxu0 0.0
        %348 = vmatpush1.msra.mxu0 %v339
        %349 = vmatprep.subr.mxu0 0.0
        %350 = vmatpush1.msra.mxu0 %v338
        %351 = vmatprep.subr.mxu0 0.0
        %352 = vmatpush1.msra.mxu0 %v337
        %353 = vmatprep.subr.mxu0 0.0
        %354 = vmatpush1.msra.mxu0 %v336
        %355 = vmatprep.subr.mxu0 0.0
        %356 = vmatpush1.msra.mxu0 %v335
        %357 = vmatprep.subr.mxu0 0.0
        %358 = vmatpush1.msra.mxu0 %v334
        %359 = vmatprep.subr.mxu0 0.0
        %360 = vmatpush1.msra.mxu0 %v333
        %361 = vmatprep.subr.mxu0 0.0
        %362 = vmatpush1.msra.mxu0 %v332
        %363 = vmatprep.subr.mxu0 0.0
        %364 = vmatpush1.msra.mxu0 %v331
        %365 = vmatprep.subr.mxu0 0.0
        %366 = vmatpush1.msra.mxu0 %v330
        %367 = vmatprep.subr.mxu0 0.0
        %368 = vmatpush1.msra.mxu0 %v329
        %369 = vmatprep.subr.mxu0 0.0
        %370 = vmatpush1.msra.mxu0 %v328
        %371 = vmatprep.subr.mxu0 0.0
        %372 = vmatpush1.msra.mxu0 %v327
        %373 = vmatprep.subr.mxu0 0.0
        %374 = vmatpush1.msra.mxu0 %v326
        %375 = vmatprep.subr.mxu0 0.0
        %376 = vmatpush1.msra.mxu0 %v325
        %377 = vmatprep.subr.mxu0 0.0
        %378 = vmatpush1.msra.mxu0 %v324
        %379 = vmatprep.subr.mxu0 0.0
        %380 = vmatpush2.msra.mxu0 0.0
        %381 = vmatprep.subr.mxu0 0.0
        %382 = vmatpush2.msra.mxu0 0.0
        %383 = vmatprep.subr.mxu0 0.0
        %384 = vmatpush2.msra.mxu0 0.0
        %385 = vmatprep.subr.mxu0 0.0
        %386 = vmatpush2.msra.mxu0 0.0
        %387 = vmatprep.subr.mxu0 0.0
        %388 = vmatpush2.msra.mxu0 0.0
        %389 = vmatprep.subr.mxu0 0.0
        %390 = vmatpush2.msra.mxu0 0.0
        %391 = vmatprep.subr.mxu0 0.0
        %392 = vmatpush2.msra.mxu0 0.0
        %393 = vmatprep.subr.mxu0 0.0
        %394 = vmatpush2.msra.mxu0 0.0
        %395 = vmatprep.subr.mxu0 0.0
        %396 = vmatpush2.msra.mxu0 0.0
        %397 = vmatprep.subr.mxu0 0.0
        %398 = vmatpush2.msra.mxu0 0.0
        %399 = vmatprep.subr.mxu0 0.0
        %400 = vmatpush2.msra.mxu0 0.0
        %401 = vmatprep.subr.mxu0 0.0
        %402 = vmatpush2.msra.mxu0 0.0
        %403 = vmatprep.subr.mxu0 0.0
        %404 = vmatpush2.msra.mxu0 0.0
        %405 = vmatprep.subr.mxu0 0.0
        %406 = vmatpush2.msra.mxu0 0.0
        %407 = vmatprep.subr.mxu0 0.0
        %408 = vmatpush2.msra.mxu0 0.0
        %409 = vmatprep.subr.mxu0 0.0
        %410 = vmatpush2.msra.mxu0 0.0
        %411 = vmatprep.mubr.f32.mxu0 0.0
        %412 = vmatmul.mubr.f32.gmra.mxu0 %v323
        %v413 = vpop.f32.mrf.mxu0
        %v414 = vadd.f32 %v345, %v413
        %v415 = vpop.f32.mrf.mxu0
        %416 = vdwg.mxu0
        %417 = vst [vmem:[%s286] sm:$0xff] %v414
        %s418 = sand.u32 %s165, 1
        %s419 = scalar_lea.sflag [#allocation5], %s418
        %s420 = sand.u32 %s165, 1
        %s421 = smul.addr %s420, 8
        %s422 = scalar_lea.vmem [#allocation8], %s421
        // Predicated region
        $region53: #{_prenorm_call.1} parent=39 // pred_check
          %p423 = pneg %p175
        $region54: #{_prenorm_call.1} parent=39 // pred_check_branch
          %425 = sbr.rel (%p423) target = $region56
        $region55: #{_prenorm_call.1} parent=39 // pred_region
          %s427 = ssub.s32 128, 128
          %428 = vsyncadd %s419, %s427
          %s429 = sadd.s32 %s28, %s27
          %s430 = smul.addr %s429, 128
          %s431 = scalar_lea.hbm %s5, %s430
          %s433 = sshll.u32 %s422, 4
          %s434 = int_to_ptr.vmem [resolvable:$true] %s433
          %436 = dma.vmem_to_hbm [thread:$0]  %s434, 128, %s431, %s419
        $region56: #{_prenorm_call.1} parent=39 // pred_fallthru
          _
      $region40: #{_prenorm_call.1} parent=5 // pred_fallthru
        _
      %p437 = scmp.le.s32.totalorder 2, %s18
      // Predicated region
      $region57: #{_prenorm_call.1} parent=5 // pred_check
        %p438 = pneg %p437
      $region58: #{_prenorm_call.1} parent=5 // pred_check_branch
        %440 = sbr.rel (%p438) target = $region60
      $region59: #{_prenorm_call.1} parent=5 // pred_region
        %s441 = ssub.s32 %s18, 2
        // Predicated region
        $region61: #{_prenorm_call.1} parent=59 // pred_check
          %p442 = pneg %p181
        $region62: #{_prenorm_call.1} parent=59 // pred_check_branch
          %444 = sbr.rel (%p442) target = $region64
        $region63: #{_prenorm_call.1} parent=59 // pred_region
          %s445 = sand.u32 %s166, 1
          %s446 = scalar_lea.sflag [#allocation5], %s445
          %s447 = sand.u32 %s166, 1
          %s448 = smul.addr %s447, 8
          %s449 = scalar_lea.vmem [#allocation8], %s448
          %450 = dma.done %s446, 128
        $region64: #{_prenorm_call.1} parent=59 // pred_fallthru
          _
      $region60: #{_prenorm_call.1} parent=5 // pred_fallthru
        _
    $region6: #{_prenorm_call.1} parent=1 // loop_footer
      %s22 = sadd.s32 1, %s18
    $region7: #{_prenorm_call.1} parent=1 // loop_footer_branch
      %17 = sbr.rel target = $region3
    $region8: #{_prenorm_call.1} parent=1 // loop_exit
      _
    %451 = vsyncpa [#allocation4], 1
    %s452 = scalar_lea.sflag [#allocation4], 1
    %453 = vsyncpa %s452, 1
    %454 = vsyncpa [#allocation7], 1
    %455 = vsyncpa [#allocation5], 1
    %s456 = scalar_lea.sflag [#allocation5], 1
    %457 = vsyncpa %s456, 1

</llo_original>
